<compile_context>
chip_gen: v7x
topology: tpu7x:2x2x1
jax: 0.10.0
libtpu: 0.0.40
codegen_flags: <defaults>
</compile_context>

<pallas_src>
import functools

import jax
import jax.numpy as jnp
from jax.experimental import pallas as pl
from jax.experimental.pallas import tpu as pltpu


def _triplet_kernel(x_ref, out_ref, *, margin, directed, dim, total_groups,
                    tile_groups):
    # x_ref: (TG, 3*D) block; row g = [anchor | positive | negative].
    # Load each D-wide lane slice separately and upcast per slice (inputs may
    # be bf16 in HBM -> halved reads) so intermediates die quickly instead of
    # keeping a full (TG, 3D) f32 temp alive.
    a = x_ref[:, 0:dim].astype(jnp.float32)          # anchors    (TG, D)
    p = x_ref[:, dim:2 * dim].astype(jnp.float32)    # positives  (TG, D)
    d01 = jnp.sqrt(jnp.sum((a - p) ** 2, axis=-1, keepdims=True))   # (TG, 1)
    n = x_ref[:, 2 * dim:3 * dim].astype(jnp.float32)  # negatives (TG, D)
    d02 = jnp.sqrt(jnp.sum((a - n) ** 2, axis=-1, keepdims=True))   # (TG, 1)

    h1 = jnp.maximum(margin - (d02 - d01), 0.0)
    if directed:
        losses = h1
    else:
        d12 = jnp.sqrt(jnp.sum((p - n) ** 2, axis=-1, keepdims=True))
        h2 = jnp.maximum(margin - (d12 - d01), 0.0)
        losses = (h1 + h2) * 0.5

    # Only the ragged-final-tile configuration compiles the mask at all
    # (static Python `if`).  Padded rows of an out-of-bounds input block may
    # hold garbage/NaN -> use a select (NOT a multiply-by-mask).
    if total_groups % tile_groups != 0:
        gid = (jax.lax.broadcasted_iota(jnp.int32, losses.shape, 0)
               + pl.program_id(0) * tile_groups)
        losses = jnp.where(gid < total_groups, losses, 0.0)

    # Raw (un-normalized) partial sum for this tile, broadcast over one
    # (8, 128)-aligned output tile (lane-dense, unmasked store).  The wrapper
    # sums the per-tile partials and divides by G exactly once.
    partial = jnp.sum(losses)
    out_ref[...] = jnp.broadcast_to(partial, out_ref.shape)


def triplet_margin_loss(embeddings, *, margin: float, directed: bool,
                        tile_groups=None):
    """embeddings: (3*G, D). Returns scalar f32 loss (mean over triplet groups)."""
    nrows, d = embeddings.shape
    assert nrows % 3 == 0, "batch must be a multiple of the group size 3"
    g = nrows // 3

    # Free reshape (row-major, zero HBM traffic): one dense row per group.
    x = embeddings.reshape(g, 3 * d)

    # Scoped-VMEM limit: 32 MiB fits every generation's physical VMEM
    # (v5e/v6e 128 MiB, v7x 64 MiB per TensorCore).  Defensively shrink if the
    # hardware query reports less headroom.
    vmem_limit = 32 * 1024 * 1024
    try:
        cap = int(pltpu.get_tpu_info().vmem_capacity_bytes)
        vmem_limit = min(vmem_limit, max(cap // 2, 8 * 1024 * 1024))
    except Exception:
        pass

    if tile_groups is None:
        itemsize = jnp.dtype(embeddings.dtype).itemsize
        # VMEM bytes of one group-row once the lane dim is padded to 128.
        pad_lanes = ((3 * d + 127) // 128) * 128
        bytes_per_group = pad_lanes * max(int(itemsize), 1)
        # Real-data budget per input block.  Peak VMEM ~= 2 blocks (double
        # buffer) + ~4 live (TG, D) f32 temps -> ~3.3x block (f32 input) /
        # ~4.7x block (bf16 input); keep the total well under vmem_limit while
        # staying multi-MiB per block (HBM-roofline plateau).
        divisor = 5 if itemsize >= 4 else 8
        budget = vmem_limit // divisor
        tile_groups = budget // bytes_per_group

    tile_groups = int(max(1, tile_groups))
    if tile_groups >= g:
        tile_groups = g
    else:
        tile_groups = max(8, (tile_groups // 8) * 8)   # sublane-aligned tiles
        if tile_groups >= g:
            tile_groups = g
    num_tiles = int(pl.cdiv(g, tile_groups))

    kernel = functools.partial(_triplet_kernel, margin=float(margin),
                               directed=bool(directed), dim=int(d),
                               total_groups=g, tile_groups=tile_groups)

    partials = pl.pallas_call(
        kernel,
        # One (8, 128)-aligned scalar tile per grid step (per-tile partials;
        # no shared accumulator -> safe to run the grid in parallel).
        out_shape=jax.ShapeDtypeStruct((num_tiles, 8, 128), jnp.float32),
        grid=(num_tiles,),
        in_specs=[
            # Dense contiguous (TG, 3*D) slab per grid step; last block dim
            # equals the full array dim, every HBM byte is read exactly once.
            pl.BlockSpec((tile_groups, 3 * d), lambda i: (i, 0)),
        ],
        out_specs=pl.BlockSpec((1, 8, 128), lambda i: (i, 0, 0)),
        compiler_params=pltpu.CompilerParams(
            # Independent per-tile outputs -> parallel grid (uses both v7x
            # TensorCores; neutral on single-TC v5e/v6e).
            dimension_semantics=("parallel",),
            vmem_limit_bytes=vmem_limit,
        ),
    )(x)

    # Final reduction: sum raw partials, divide by G exactly once.
    return jnp.sum(partials[:, 0, 0]) / g


def _reference(embeddings, *, margin, directed):
    g = embeddings.shape[0] // 3
    e = embeddings.reshape(g, 3, -1).astype(jnp.float32)
    d01 = jnp.linalg.norm(e[:, 0] - e[:, 1], axis=-1)
    d02 = jnp.linalg.norm(e[:, 0] - e[:, 2], axis=-1)
    h1 = jnp.maximum(margin - (d02 - d01), 0.0)
    if directed:
        losses = h1
    else:
        d12 = jnp.linalg.norm(e[:, 1] - e[:, 2], axis=-1)
        h2 = jnp.maximum(margin - (d12 - d01), 0.0)
        losses = (h1 + h2) * 0.5
    return jnp.mean(losses)


if __name__ == "__main__":
    key = jax.random.PRNGKey(0)
    k1, k2, k3 = jax.random.split(key, 3)
    margin = 0.2
    ok = True

    cases = []
    # Small aligned case: 8 triplet groups, 32-dim embeddings, auto tile size
    # (clamps to a single tile).
    emb1 = jax.random.normal(k1, (3 * 8, 32), dtype=jnp.float32)
    cases.append((emb1, None, 1e-5, "aligned"))
    # Ragged case: 10 groups with an 8-group tile -> 2 grid steps, last one
    # padded; exercises the in-kernel mask and per-tile partial outputs.
    emb2 = jax.random.normal(k2, (3 * 10, 32), dtype=jnp.float32)
    cases.append((emb2, 8, 1e-5, "ragged"))
    # bf16 inputs (halved HBM bytes, in-kernel f32 upcast), 2 full tiles.
    emb3 = jax.random.normal(k3, (3 * 16, 64), dtype=jnp.float32).astype(jnp.bfloat16)
    cases.append((emb3, 8, 1e-4, "bf16"))

    for emb, tg, tol, tag in cases:
        for directed in (True, False):
            loss = jax.block_until_ready(
                triplet_margin_loss(emb, margin=margin, directed=directed,
                                    tile_groups=tg))
            ref = _reference(emb, margin=margin, directed=directed)
            if not bool(jnp.allclose(loss, ref, rtol=tol, atol=tol)):
                ok = False
                print(f"MISMATCH {tag} directed={directed}: kernel={loss} ref={ref}")

    if ok:
        print("KERNEL_OK")
</pallas_src>

<mosaic_0001>
module attributes {stable_mosaic.version = 11 : i64} {
  func.func @_triplet_kernel(%arg0: i32, %arg1: memref<8x96xf32, #tpu.memory_space<vmem>>, %arg2: memref<1x8x128xf32, #tpu.memory_space<vmem>>) attributes {dimension_semantics = [#tpu.dimension_semantics<parallel>], iteration_bounds = array<i64: 1>, scalar_prefetch = 0 : i64, scratch_operands = 0 : i64, tpu.core_type = #tpu.core_type<tc>, window_params = [{transform_indices = @transform_0, window_bounds = array<i64: 8, 96>}, {transform_indices = @transform_1, window_bounds = array<i64: 1, 8, 128>}]} {
    %c0 = arith.constant 0 : index
    %c0_0 = arith.constant 0 : index
    %0 = vector.load %arg1[%c0, %c0_0] : memref<8x96xf32, #tpu.memory_space<vmem>>, vector<8x32xf32>
    %c0_1 = arith.constant 0 : index
    %c32 = arith.constant 32 : index
    %1 = vector.load %arg1[%c0_1, %c32] : memref<8x96xf32, #tpu.memory_space<vmem>>, vector<8x32xf32>
    %2 = arith.subf %0, %1 : vector<8x32xf32>
    %3 = arith.mulf %2, %2 : vector<8x32xf32>
    %cst = arith.constant dense<0.000000e+00> : vector<8xf32>
    %4 = vector.multi_reduction <add>, %3, %cst [1] : vector<8x32xf32> to vector<8xf32>
    %5 = vector.shape_cast %4 : vector<8xf32> to vector<8x1xf32>
    %6 = math.sqrt %5 : vector<8x1xf32>
    %c0_2 = arith.constant 0 : index
    %c64 = arith.constant 64 : index
    %7 = vector.load %arg1[%c0_2, %c64] : memref<8x96xf32, #tpu.memory_space<vmem>>, vector<8x32xf32>
    %8 = arith.subf %0, %7 : vector<8x32xf32>
    %9 = arith.mulf %8, %8 : vector<8x32xf32>
    %cst_3 = arith.constant dense<0.000000e+00> : vector<8xf32>
    %10 = vector.multi_reduction <add>, %9, %cst_3 [1] : vector<8x32xf32> to vector<8xf32>
    %11 = vector.shape_cast %10 : vector<8xf32> to vector<8x1xf32>
    %12 = math.sqrt %11 : vector<8x1xf32>
    %13 = arith.subf %12, %6 : vector<8x1xf32>
    %cst_4 = arith.constant 2.000000e-01 : f32
    %14 = vector.broadcast %cst_4 : f32 to vector<8x1xf32>
    %15 = arith.subf %14, %13 : vector<8x1xf32>
    %cst_5 = arith.constant 0.000000e+00 : f32
    %16 = vector.broadcast %cst_5 : f32 to vector<8x1xf32>
    %17 = arith.maximumf %15, %16 : vector<8x1xf32>
    %18 = vector.shape_cast %17 : vector<8x1xf32> to vector<1x8x1xf32>
    %cst_6 = arith.constant dense<0.000000e+00> : vector<1xf32>
    %19 = vector.multi_reduction <add>, %18, %cst_6 [1, 2] : vector<1x8x1xf32> to vector<1xf32>
    %20 = vector.shape_cast %19 : vector<1xf32> to vector<1x1x1xf32>
    %21 = vector.extract %20[0, 0, 0] : f32 from vector<1x1x1xf32>
    %22 = vector.broadcast %21 : f32 to vector<1x8x128xf32>
    %c0_7 = arith.constant 0 : index
    %c0_8 = arith.constant 0 : index
    %c0_9 = arith.constant 0 : index
    %23 = vector.load %arg2[%c0_7, %c0_8, %c0_9] : memref<1x8x128xf32, #tpu.memory_space<vmem>>, vector<1x8x128xf32>
    tpu.vector_store %arg2[%c0_7, %c0_8, %c0_9], %22 {strides = array<i32>} : memref<1x8x128xf32, #tpu.memory_space<vmem>>, vector<1x8x128xf32>,
    return
  }
  func.func @transform_0(%arg0: i32) -> (i32, i32) {
    %c0_i32 = arith.constant 0 : i32
    %c0_i32_0 = arith.constant 0 : i32
    return %arg0, %c0_i32 : i32, i32
  }
  func.func @transform_1(%arg0: i32) -> (i32, i32, i32) {
    %c0_i32 = arith.constant 0 : i32
    %c0_i32_0 = arith.constant 0 : i32
    %c0_i32_1 = arith.constant 0 : i32
    return %arg0, %c0_i32, %c0_i32_0 : i32, i32, i32
  }
}

</mosaic_0001>

<llo_original>
// kernel: tpu_custom_call.1
$region0: #{tpu_custom_call.1}
  #allocation0 [shape = 'u32[]', space=smem, size = 0x4, offset = 0x4, fixed_abs, tag = 'smem constant byte address 0x4 - core index']
  #allocation1 [shape = 'u32[144,128]{1,0:T(1,128)}', space=vmem, size = 0x12000, scoped, tag = 'internal scratch']
  %s0 = inlined_call_operand.hbm [shape: f32[8,96], index: 0, kind: input, shape index: {}]
  %s1 = inlined_call_operand.hbm [shape: f32[1,8,128], index: 1, kind: output, shape index: {}]
  %s2 = sld [smem:[#allocation0]]
  $region18: #{tpu_custom_call.1} parent=0
    _
  %s4 = ssub.s32 1, %s2
  %s5 = scalar_select 0, %s4, %s2
  $region1: #{tpu_custom_call.1} parent=0
    #allocation2 [shape = 'u8[4096]{0}', space=vmem, size = 0x1000, scoped, tag = 'input window, operand 0, single buffered']
    #allocation3 [shape = 's32[1]{0}', space=sflag, size = 0x4, scoped, tag = 'scoped memory for tpu_custom_call.1']
    #allocation4 [shape = 's32[1]{0}', space=sflag, size = 0x4, scoped, tag = 'scoped memory for tpu_custom_call.1']
    #allocation5 [shape = 'u8[4096]{0}', space=vmem, size = 0x1000, scoped, tag = 'output window, operand 0, single buffered']
    %6 = vsyncpa [#allocation3], 0
    %7 = vsyncpa [#allocation4], 0
    // Predicated region
    $region2: #{tpu_custom_call.1} parent=1 // pred_check
      _
    $region3: #{tpu_custom_call.1} parent=1 // pred_check_branch
      %9 = sbr.rel (0) target = $region5
    $region4: #{tpu_custom_call.1} parent=1 // pred_region
      %s11 = ssub.s32 128, 128
      %12 = vsyncadd [#allocation3], %s11
      %s14 = sshll.u32 [#allocation2], 4
      %s15 = int_to_ptr.vmem [resolvable:$true] %s14
      %17 = dma.hbm_to_vmem [thread:$0]  %s0, 128, %s15, [#allocation3]
    $region5: #{tpu_custom_call.1} parent=1 // pred_fallthru
      _
    // Predicated region
    $region6: #{tpu_custom_call.1} parent=1 // pred_check
      _
    $region7: #{tpu_custom_call.1} parent=1 // pred_check_branch
      %19 = sbr.rel (0) target = $region9
    $region8: #{tpu_custom_call.1} parent=1 // pred_region
      %20 = dma.done [#allocation3], 128
    $region9: #{tpu_custom_call.1} parent=1 // pred_fallthru
      _
    %v21 = vld [vmem:[#allocation2] sm:$0xff]
    %23 = vrot.lane.b32.xlu0 %v21, 96
    %v24 = vpop.permute.xlu0 %23
    %v26 = vsub.f32 %v21, %v24
    %v27 = vmul.f32 %v26, %v26
    %vm28 = vcmask 261120
    %v29 = vsel %vm28, %v27, 0.0
    %30 = vadd.xlane.f32.xlu0 %v29
    %v31 = vpop.xlane.xlu0 %30
    %v32 = vrsqrt.pop %v31
    %v33 = vmul.f32 %v31, %v32
    %vm34 = vcmp.eq.f32.partialorder %v31, inf
    %v35 = vsel %vm34, %v31, %v33
    %vm36 = vcmp.eq.f32.partialorder %v31, 0.0
    %v37 = vand.u32 %v31, 2147483648
    %v38 = vsel %vm36, %v37, %v35
    %39 = vrot.lane.b32.xlu0 %v21, 64
    %v40 = vpop.permute.xlu0 %39
    %v42 = vsub.f32 %v21, %v40
    %v43 = vmul.f32 %v42, %v42
    %v44 = vsel %vm28, %v43, 0.0
    %45 = vadd.xlane.f32.xlu0 %v44
    %v46 = vpop.xlane.xlu0 %45
    %v47 = vrsqrt.pop %v46
    %v48 = vmul.f32 %v46, %v47
    %vm49 = vcmp.eq.f32.partialorder %v46, inf
    %v50 = vsel %vm49, %v46, %v48
    %vm51 = vcmp.eq.f32.partialorder %v46, 0.0
    %v52 = vand.u32 %v46, 2147483648
    %v53 = vsel %vm51, %v52, %v50
    %v54 = vsub.f32 %v53, %v38
    %v55 = vsub.f32 0.2, %v54
    %v56 = vmax.f32 %v55, 0.0
    %vm57 = vcmask 7168
    %v58 = vsel %vm57, %v56, 0.0
    %59 = vadd.xlane.f32.xlu0 %v58
    %v60 = vpop.xlane.xlu0 %59
    %v61 = vrot.slane %v60, 4
    %v62 = vadd.f32 %v60, %v61
    %v63 = vrot.slane %v62, 2
    %v64 = vadd.f32 %v62, %v63
    %v65 = vrot.slane %v64, 1
    %v66 = vadd.f32 %v64, %v65
    %s67 = vtos %v66
    %v68 = vstv %s67
    %69 = vst [vmem:[#allocation5] sm:$0xff] %v68
    // Predicated region
    $region10: #{tpu_custom_call.1} parent=1 // pred_check
      _
    $region11: #{tpu_custom_call.1} parent=1 // pred_check_branch
      %71 = sbr.rel (0) target = $region13
    $region12: #{tpu_custom_call.1} parent=1 // pred_region
      %s73 = ssub.s32 128, 128
      %74 = vsyncadd [#allocation4], %s73
      %s76 = sshll.u32 [#allocation5], 4
      %s77 = int_to_ptr.vmem [resolvable:$true] %s76
      %79 = dma.vmem_to_hbm [thread:$0]  %s77, 128, %s1, [#allocation4]
    $region13: #{tpu_custom_call.1} parent=1 // pred_fallthru
      _
    // Predicated region
    $region14: #{tpu_custom_call.1} parent=1 // pred_check
      _
    $region15: #{tpu_custom_call.1} parent=1 // pred_check_branch
      %81 = sbr.rel (0) target = $region17
    $region16: #{tpu_custom_call.1} parent=1 // pred_region
      %82 = dma.done [#allocation4], 128
    $region17: #{tpu_custom_call.1} parent=1 // pred_fallthru
      _
    %83 = vsyncpa [#allocation3], 1
    %84 = vsyncpa [#allocation4], 1

</llo_original>
